<compile_context>
chip_gen: v6e
topology: v6e:2x2x1
jax: 0.10.0
libtpu: 0.0.40
codegen_flags: <defaults>
</compile_context>

<pallas_src>
import functools

import jax
import jax.numpy as jnp
from jax.experimental import pallas as pl
from jax.experimental.pallas import tpu as pltpu


HIDDEN = 64          # per-branch hidden width
FUSED = 2 * HIDDEN   # fused (actor|critic) lane width = 128


def _round_up(x, m):
    return ((x + m - 1) // m) * m


def _cdiv(a, b):
    return (a + b - 1) // b


def _device_plan():
    """Generation-aware tiling plan (max tile rows, scoped-VMEM budget, #TCs)."""
    try:
        kind = jax.devices()[0].device_kind.lower()
    except Exception:
        kind = ""
    if "v7" in kind or "7x" in kind:
        return {"max_tile": 16384, "vmem_budget": 24 << 20, "num_tc": 2}
    if "v6" in kind:
        return {"max_tile": 8192, "vmem_budget": 24 << 20, "num_tc": 1}
    if "v5" in kind:
        # v5e default scoped VMEM is only 16 MiB -> stay well inside it.
        return {"max_tile": 8192, "vmem_budget": 12 << 20, "num_tc": 1}
    return {"max_tile": 4096, "vmem_budget": 12 << 20, "num_tc": 1}


def _mlp_policy_fused_kernel(x_ref, w1_ref, w2_ref, p_ref, out_ref):
    """Fused actor+critic forward for one batch tile.

    x_ref   : [bb, D]            inputs (f32)
    w1_ref  : [D, 128]           [a_fc1 | v_fc1] weights (matmul dtype)
    w2_ref  : [128, 128]         block-diag [[a_fc2, 0], [0, v_fc2]] (matmul dtype)
    p_ref   : [8, 128]  f32      row0: fused fc1 bias, row1: fused fc2 bias,
                                 row2: [0..0 | v_fc3 weight row], row3: v_fc3 bias,
                                 row4: actor lane mask (lanes 0:64),
                                 row5: value-hi lane mask (lane 64),
                                 row6: value-lo lane mask (lane 65)
    out_ref : [bb, 128] bf16     lanes 0:64 actor, lane 64 value-hi, lane 65 value-lo
    """
    p = p_ref[...]
    b1, b2, w3 = p[0:1, :], p[1:2, :], p[2:3, :]
    b3 = p[3:4, 0:1]
    mask_a, mask_hi, mask_lo = p[4:5, :], p[5:6, :], p[6:7, :]

    xm = x_ref[...].astype(w1_ref.dtype)

    # fused fc1: one lane-dense [bb, D] @ [D, 128] matmul (f32 accumulation)
    h1 = jnp.tanh(
        jnp.dot(xm, w1_ref[...], preferred_element_type=jnp.float32) + b1)

    # fused fc2: one lane-dense [bb, 128] @ [128, 128] block-diag matmul
    h2 = jnp.tanh(
        jnp.dot(h1.astype(w2_ref.dtype), w2_ref[...],
                preferred_element_type=jnp.float32) + b2)
    # h2[:, :64] = actor output (already tanh'd); h2[:, 64:] = critic hidden

    # value head on VPU (multiply) + XLU (lane reduce) instead of an N=1 matmul
    value = jnp.sum(h2 * w3, axis=-1, keepdims=True) + b3          # [bb, 1] f32

    # two-term bf16 split keeps ~f32 value precision through the bf16 slab
    v_hi = value.astype(jnp.bfloat16).astype(jnp.float32)
    v_lo = value - v_hi

    # lane-pack with precomputed masks (no per-tile iota); single unmasked
    # 128-lane-wide bf16 store
    packed = h2 * mask_a + v_hi * mask_hi + v_lo * mask_lo
    out_ref[...] = packed.astype(out_ref.dtype)


def pack_mlp_policy_params(params, matmul_dtype=jnp.bfloat16):
    """One-time packing of MLPPolicy params for the fused kernel.

    Hoisted out of the forward wrapper so the ~8 tiny concatenate/block/astype
    ops are not re-launched on every call (dominant cost at RL batch sizes).
    bf16 matmul inputs are native on every TPU MXU; pass matmul_dtype=f32 if
    the value baseline needs exact-f32 matmul inputs (accumulation is f32
    either way).
    """
    f32 = jnp.float32
    zh = jnp.zeros((HIDDEN, HIDDEN), f32)
    w1 = jnp.concatenate([params["aw1"], params["vw1"]], axis=1).astype(matmul_dtype)
    w2 = jnp.block([[params["aw2"], zh],
                    [zh, params["vw2"]]]).astype(matmul_dtype)

    b1 = jnp.concatenate([params["ab1"], params["vb1"]], axis=1)             # [1,128]
    b2 = jnp.concatenate([params["ab2"], params["vb2"]], axis=1)             # [1,128]
    w3 = jnp.concatenate([jnp.zeros((1, HIDDEN), f32),
                          params["vw3"].T.astype(f32)], axis=1)              # [1,128]
    b3 = jnp.broadcast_to(params["vb3"].astype(f32).reshape(1, 1), (1, FUSED))
    lane = jnp.arange(FUSED, dtype=jnp.int32)[None, :]
    mask_a = (lane < HIDDEN).astype(f32)
    mask_hi = (lane == HIDDEN).astype(f32)
    mask_lo = (lane == HIDDEN + 1).astype(f32)
    pad = jnp.zeros((1, FUSED), f32)
    ptile = jnp.concatenate([b1, b2, w3, b3, mask_a, mask_hi, mask_lo, pad], axis=0)
    return {"w1": w1, "w2": w2, "ptile": ptile}


@functools.partial(jax.jit, static_argnames=("block_b",))
def mlp_policy_forward(inputs, states, masks, packed, block_b=None):
    """Pallas wrapper for MLPPolicy.forward.

    inputs: [B, num_inputs] float32
    states: passed through untouched (state_size == 1)
    masks : unused by the MLP forward (kept for API parity)
    packed: output of pack_mlp_policy_params
    block_b: optional cap on the batch tile (None = auto, generation-aware)
    """
    del masks  # unused in MLPPolicy.forward
    B, D = inputs.shape
    w1, w2, ptile = packed["w1"], packed["w2"], packed["ptile"]

    # ---- generation-aware batch tiling ----
    plan = _device_plan()
    out_itemsize = 2                                    # bf16 output slab
    per_row = 2 * (D * 4 + FUSED * out_itemsize)        # double-buffered x + out
    vmem_cap = max(8, ((plan["vmem_budget"] // per_row) // 8) * 8)
    bb_cap = min(plan["max_tile"], vmem_cap)
    if block_b is not None:
        bb_cap = max(8, min(bb_cap, _round_up(int(block_b), 8)))
    if plan["num_tc"] > 1 and B > 2048:
        # >=1 tile per TensorCore so the "parallel" grid axis uses both cores
        bb_cap = min(bb_cap, max(8, _round_up(_cdiv(B, plan["num_tc"]), 8)))

    if B <= bb_cap and (B % 8 == 0 or B <= 512):
        # single tile; at most a 7-row pad, and only for tiny unaligned batches
        bb = _round_up(B, 8)
        b_total = bb
        x = inputs if b_total == B else jnp.pad(inputs, ((0, b_total - B), (0, 0)))
    else:
        # multi-tile (or large unaligned) batch: no wrapper pad; balanced tiles
        # with a ragged last block (OOB rows masked on write, sliced off below)
        n_tiles = _cdiv(B, bb_cap)
        bb = min(bb_cap, _round_up(_cdiv(B, n_tiles), 8))
        b_total = B
        x = inputs
    grid = (_cdiv(b_total, bb),)

    flops = 2 * b_total * (D * FUSED + FUSED * FUSED) + 2 * b_total * FUSED
    bytes_accessed = (b_total * D * 4 + b_total * FUSED * out_itemsize
                      + w1.size * w1.dtype.itemsize
                      + w2.size * w2.dtype.itemsize
                      + ptile.size * 4)
    cost = pl.CostEstimate(flops=flops,
                           transcendentals=2 * b_total * FUSED,
                           bytes_accessed=bytes_accessed)

    slab = pl.pallas_call(
        _mlp_policy_fused_kernel,
        out_shape=jax.ShapeDtypeStruct((b_total, FUSED), jnp.bfloat16),
        grid_spec=pltpu.PrefetchScalarGridSpec(
            num_scalar_prefetch=0,
            grid=grid,
            in_specs=[
                pl.BlockSpec((bb, D), lambda i: (i, 0)),       # inputs tile
                pl.BlockSpec(w1.shape, lambda i: (0, 0)),      # fused fc1 weights
                pl.BlockSpec(w2.shape, lambda i: (0, 0)),      # fused fc2 weights
                pl.BlockSpec(ptile.shape, lambda i: (0, 0)),   # biases/value head/masks
            ],
            out_specs=pl.BlockSpec((bb, FUSED), lambda i: (i, 0)),
        ),
        compiler_params=pltpu.CompilerParams(
            dimension_semantics=("parallel",)),
        cost_estimate=cost,
    )(x, w1, w2, ptile)

    actor = slab[:B, :HIDDEN].astype(jnp.float32)
    value = (slab[:B, HIDDEN:HIDDEN + 1].astype(jnp.float32)
             + slab[:B, HIDDEN + 1:HIDDEN + 2].astype(jnp.float32))
    return value, actor, states


def init_mlp_policy_params(key, num_inputs):
    """Deterministic init matching weights_init_mlp:
       W ~ N(0,1), each output row normalized to unit L2 norm; bias = 0."""
    def linear(k, fan_in, fan_out):
        # PyTorch layout is [out, in]; normalize over dim=1 (the input dim).
        w = jax.random.normal(k, (fan_out, fan_in), dtype=jnp.float32)
        w = w / jnp.sqrt(jnp.sum(w * w, axis=1, keepdims=True))
        b = jnp.zeros((1, fan_out), dtype=jnp.float32)
        return w.T, b  # store transposed [in, out] for x @ W

    ks = jax.random.split(key, 5)
    aw1, ab1 = linear(ks[0], num_inputs, HIDDEN)
    aw2, ab2 = linear(ks[1], HIDDEN, HIDDEN)
    vw1, vb1 = linear(ks[2], num_inputs, HIDDEN)
    vw2, vb2 = linear(ks[3], HIDDEN, HIDDEN)
    vw3, vb3 = linear(ks[4], HIDDEN, 1)
    # TODO(synk): self.dist (Categorical/DiagGaussian) heads are used only in
    # act()/evaluate_actions(), not in forward(); not implemented here.
    return dict(aw1=aw1, ab1=ab1, aw2=aw2, ab2=ab2,
                vw1=vw1, vb1=vb1, vw2=vw2, vb2=vb2, vw3=vw3, vb3=vb3)


def _reference_forward(inputs, states, params):
    """Pure-JAX f32 reference for a correctness check."""
    h = jnp.tanh(inputs @ params["vw1"] + params["vb1"])
    h = jnp.tanh(h @ params["vw2"] + params["vb2"])
    value = h @ params["vw3"] + params["vb3"]
    a = jnp.tanh(inputs @ params["aw1"] + params["ab1"])
    a = jnp.tanh(a @ params["aw2"] + params["ab2"])
    return value, a, states


if __name__ == "__main__":
    key = jax.random.PRNGKey(0)
    k_param, k_x1, k_x2 = jax.random.split(key, 3)

    NUM_INPUTS = 32   # observation dim

    params = init_mlp_policy_params(k_param, NUM_INPUTS)
    packed = pack_mlp_policy_params(params)   # one-time packing, bf16 MXU inputs

    def check(B, k, block_b=None, tol=5e-2):
        inputs = jax.random.normal(k, (B, NUM_INPUTS), dtype=jnp.float32)
        states = jnp.zeros((B, 1), dtype=jnp.float32)   # state_size == 1
        masks = jnp.ones((B, 1), dtype=jnp.float32)
        value, actor, out_states = mlp_policy_forward(
            inputs, states, masks, packed, block_b=block_b)
        jax.block_until_ready((value, actor, out_states))
        ref_value, ref_actor, _ = _reference_forward(inputs, states, params)
        assert value.shape == (B, 1) and actor.shape == (B, HIDDEN)
        assert jnp.allclose(value, ref_value, atol=tol, rtol=tol)
        assert jnp.allclose(actor, ref_actor, atol=tol, rtol=tol)
        assert jnp.array_equal(out_states, states)

    # single padded tile (B deliberately not a multiple of 8)
    check(50, k_x1)
    # multi-tile grid exercising the no-pad, ragged-last-block path
    check(300, k_x2, block_b=128)

    print("KERNEL_OK")
</pallas_src>

<mosaic_0001>
module attributes {stable_mosaic.version = 11 : i64} {
  func.func @_mlp_policy_fused_kernel(%arg0: i32, %arg1: memref<56x32xf32, #tpu.memory_space<vmem>>, %arg2: memref<32x128xbf16, #tpu.memory_space<vmem>>, %arg3: memref<128x128xbf16, #tpu.memory_space<vmem>>, %arg4: memref<8x128xf32, #tpu.memory_space<vmem>>, %arg5: memref<56x128xbf16, #tpu.memory_space<vmem>>) attributes {dimension_semantics = [#tpu.dimension_semantics<parallel>], iteration_bounds = array<i64: 1>, scalar_prefetch = 0 : i64, scratch_operands = 0 : i64, tpu.core_type = #tpu.core_type<tc>, window_params = [{transform_indices = @transform_0, window_bounds = array<i64: 56, 32>}, {pipeline_mode = #tpu.pipeline_mode<synchronous>, transform_indices = @transform_1, window_bounds = array<i64: 32, 128>}, {pipeline_mode = #tpu.pipeline_mode<synchronous>, transform_indices = @transform_2, window_bounds = array<i64: 128, 128>}, {pipeline_mode = #tpu.pipeline_mode<synchronous>, transform_indices = @transform_3, window_bounds = array<i64: 8, 128>}, {transform_indices = @transform_4, window_bounds = array<i64: 56, 128>}]} {
    %c0 = arith.constant 0 : index
    %c0_0 = arith.constant 0 : index
    %0 = vector.load %arg4[%c0, %c0_0] : memref<8x128xf32, #tpu.memory_space<vmem>>, vector<8x128xf32>
    %1 = vector.extract_strided_slice %0 {offsets = [0, 0], sizes = [1, 128], strides = [1, 1]} : vector<8x128xf32> to vector<1x128xf32>
    %2 = vector.extract_strided_slice %0 {offsets = [1, 0], sizes = [1, 128], strides = [1, 1]} : vector<8x128xf32> to vector<1x128xf32>
    %3 = vector.extract_strided_slice %0 {offsets = [2, 0], sizes = [1, 128], strides = [1, 1]} : vector<8x128xf32> to vector<1x128xf32>
    %4 = vector.extract_strided_slice %0 {offsets = [3, 0], sizes = [1, 1], strides = [1, 1]} : vector<8x128xf32> to vector<1x1xf32>
    %5 = vector.extract_strided_slice %0 {offsets = [4, 0], sizes = [1, 128], strides = [1, 1]} : vector<8x128xf32> to vector<1x128xf32>
    %6 = vector.extract_strided_slice %0 {offsets = [5, 0], sizes = [1, 128], strides = [1, 1]} : vector<8x128xf32> to vector<1x128xf32>
    %7 = vector.extract_strided_slice %0 {offsets = [6, 0], sizes = [1, 128], strides = [1, 1]} : vector<8x128xf32> to vector<1x128xf32>
    %c0_1 = arith.constant 0 : index
    %c0_2 = arith.constant 0 : index
    %8 = vector.load %arg1[%c0_1, %c0_2] : memref<56x32xf32, #tpu.memory_space<vmem>>, vector<56x32xf32>
    %9 = arith.truncf %8 : vector<56x32xf32> to vector<56x32xbf16>
    %c0_3 = arith.constant 0 : index
    %c0_4 = arith.constant 0 : index
    %10 = vector.load %arg2[%c0_3, %c0_4] : memref<32x128xbf16, #tpu.memory_space<vmem>>, vector<32x128xbf16>
    %cst = arith.constant dense<0.000000e+00> : vector<56x128xf32>
    %11 = tpu.matmul %9, %10, %cst {dimension_numbers = #tpu.dot_dimension_numbers<[1], [0], [0], [1], [0, 0, 1, 1], [], []>} : vector<56x32xbf16>, vector<32x128xbf16>, vector<56x128xf32> -> vector<56x128xf32>
    %12 = vector.broadcast %1 : vector<1x128xf32> to vector<56x128xf32>
    %13 = arith.addf %11, %12 : vector<56x128xf32>
    %14 = math.tanh %13 : vector<56x128xf32>
    %15 = arith.truncf %14 : vector<56x128xf32> to vector<56x128xbf16>
    %c0_5 = arith.constant 0 : index
    %c0_6 = arith.constant 0 : index
    %16 = vector.load %arg3[%c0_5, %c0_6] : memref<128x128xbf16, #tpu.memory_space<vmem>>, vector<128x128xbf16>
    %cst_7 = arith.constant dense<0.000000e+00> : vector<56x128xf32>
    %17 = tpu.matmul %15, %16, %cst_7 {dimension_numbers = #tpu.dot_dimension_numbers<[1], [0], [0], [1], [0, 0, 1, 1], [], []>} : vector<56x128xbf16>, vector<128x128xbf16>, vector<56x128xf32> -> vector<56x128xf32>
    %18 = vector.broadcast %2 : vector<1x128xf32> to vector<56x128xf32>
    %19 = arith.addf %17, %18 : vector<56x128xf32>
    %20 = math.tanh %19 : vector<56x128xf32>
    %21 = vector.broadcast %3 : vector<1x128xf32> to vector<56x128xf32>
    %22 = arith.mulf %20, %21 : vector<56x128xf32>
    %cst_8 = arith.constant dense<0.000000e+00> : vector<56xf32>
    %23 = vector.multi_reduction <add>, %22, %cst_8 [1] : vector<56x128xf32> to vector<56xf32>
    %24 = vector.shape_cast %23 : vector<56xf32> to vector<56x1xf32>
    %25 = vector.broadcast %4 : vector<1x1xf32> to vector<56x1xf32>
    %26 = arith.addf %24, %25 : vector<56x1xf32>
    %27 = arith.truncf %26 : vector<56x1xf32> to vector<56x1xbf16>
    %28 = arith.extf %27 : vector<56x1xbf16> to vector<56x1xf32>
    %29 = arith.subf %26, %28 : vector<56x1xf32>
    %30 = vector.broadcast %5 : vector<1x128xf32> to vector<56x128xf32>
    %31 = arith.mulf %20, %30 : vector<56x128xf32>
    %32 = vector.broadcast %28 : vector<56x1xf32> to vector<56x128xf32>
    %33 = vector.broadcast %6 : vector<1x128xf32> to vector<56x128xf32>
    %34 = arith.mulf %32, %33 : vector<56x128xf32>
    %35 = arith.addf %31, %34 : vector<56x128xf32>
    %36 = vector.broadcast %29 : vector<56x1xf32> to vector<56x128xf32>
    %37 = vector.broadcast %7 : vector<1x128xf32> to vector<56x128xf32>
    %38 = arith.mulf %36, %37 : vector<56x128xf32>
    %39 = arith.addf %35, %38 : vector<56x128xf32>
    %40 = arith.truncf %39 : vector<56x128xf32> to vector<56x128xbf16>
    %c0_9 = arith.constant 0 : index
    %c0_10 = arith.constant 0 : index
    %41 = vector.load %arg5[%c0_9, %c0_10] : memref<56x128xbf16, #tpu.memory_space<vmem>>, vector<56x128xbf16>
    tpu.vector_store %arg5[%c0_9, %c0_10], %40 {strides = array<i32>} : memref<56x128xbf16, #tpu.memory_space<vmem>>, vector<56x128xbf16>,
    return
  }
  func.func @transform_0(%arg0: i32) -> (i32, i32) {
    %c0_i32 = arith.constant 0 : i32
    %c0_i32_0 = arith.constant 0 : i32
    return %arg0, %c0_i32 : i32, i32
  }
  func.func @transform_1(%arg0: i32) -> (i32, i32) {
    %c0_i32 = arith.constant 0 : i32
    %c0_i32_0 = arith.constant 0 : i32
    %c0_i32_1 = arith.constant 0 : i32
    return %c0_i32, %c0_i32_0 : i32, i32
  }
  func.func @transform_2(%arg0: i32) -> (i32, i32) {
    %c0_i32 = arith.constant 0 : i32
    %c0_i32_0 = arith.constant 0 : i32
    %c0_i32_1 = arith.constant 0 : i32
    return %c0_i32, %c0_i32_0 : i32, i32
  }
  func.func @transform_3(%arg0: i32) -> (i32, i32) {
    %c0_i32 = arith.constant 0 : i32
    %c0_i32_0 = arith.constant 0 : i32
    %c0_i32_1 = arith.constant 0 : i32
    return %c0_i32, %c0_i32_0 : i32, i32
  }
  func.func @transform_4(%arg0: i32) -> (i32, i32) {
    %c0_i32 = arith.constant 0 : i32
    %c0_i32_0 = arith.constant 0 : i32
    return %arg0, %c0_i32 : i32, i32
  }
}

</mosaic_0001>

<llo_original>
// kernel: mlp_policy_forward.1
$region0: #{mlp_policy_forward.1}
  #allocation0 [shape = 'u32[]', space=smem, size = 0x4, offset = 0x4, fixed_abs, tag = 'smem constant byte address 0x4 - core index']
  #allocation1 [shape = 'u32[144,128]{1,0:T(1,128)}', space=vmem, size = 0x12000, scoped, tag = 'internal scratch']
  %s0 = inlined_call_operand.vmem [shape: f32[56,32], index: 0, kind: input, shape index: {}]
  %s1 = inlined_call_operand.vmem [shape: bf16[32,128], index: 1, kind: input, shape index: {}]
  %s2 = inlined_call_operand.vmem [shape: bf16[128,128], index: 2, kind: input, shape index: {}]
  %s3 = inlined_call_operand.vmem [shape: f32[8,128], index: 3, kind: input, shape index: {}]
  %s4 = inlined_call_operand.vmem [shape: bf16[56,128], index: 4, kind: output, shape index: {}]
  %s5 = sld [smem:[#allocation0]]
  $region26: #{mlp_policy_forward.1} parent=0
    _
  %s7 = ssub.s32 1, %s5
  %s8 = scalar_select 0, %s7, %s5
  // Predicated region
  $region2: #{mlp_policy_forward.1} parent=0 // pred_check
    _
  $region3: #{mlp_policy_forward.1} parent=0 // pred_check_branch
    %10 = sbr.rel (0) target = $region5
  $region4: #{mlp_policy_forward.1} parent=0 // pred_region
    _
  $region5: #{mlp_policy_forward.1} parent=0 // pred_fallthru
    _
  // Predicated region
  $region6: #{mlp_policy_forward.1} parent=0 // pred_check
    _
  $region7: #{mlp_policy_forward.1} parent=0 // pred_check_branch
    %12 = sbr.rel (0) target = $region9
  $region8: #{mlp_policy_forward.1} parent=0 // pred_region
    _
  $region9: #{mlp_policy_forward.1} parent=0 // pred_fallthru
    _
  // Predicated region
  $region10: #{mlp_policy_forward.1} parent=0 // pred_check
    _
  $region11: #{mlp_policy_forward.1} parent=0 // pred_check_branch
    %14 = sbr.rel (0) target = $region13
  $region12: #{mlp_policy_forward.1} parent=0 // pred_region
    _
  $region13: #{mlp_policy_forward.1} parent=0 // pred_fallthru
    _
  // Predicated region
  $region14: #{mlp_policy_forward.1} parent=0 // pred_check
    _
  $region15: #{mlp_policy_forward.1} parent=0 // pred_check_branch
    %16 = sbr.rel (0) target = $region17
  $region16: #{mlp_policy_forward.1} parent=0 // pred_region
    _
  $region17: #{mlp_policy_forward.1} parent=0 // pred_fallthru
    _
  %v18 = vld [vmem:[%s3] sm:$0xff]
  %v19 = vld [vmem:[%s0] sm:$0xff]
  %v20 = vld [vmem:[%s0 + $0x8] sm:$0xff]
  %v21 = vld [vmem:[%s0 + $0x10] sm:$0xff]
  %v22 = vld [vmem:[%s0 + $0x18] sm:$0xff]
  %v23 = vld [vmem:[%s0 + $0x20] sm:$0xff]
  %v24 = vld [vmem:[%s0 + $0x28] sm:$0xff]
  %v25 = vld [vmem:[%s0 + $0x30] sm:$0xff]
  %v26 = vpack.c.bf16 %v20, %v19
  %v27 = vpack.c.bf16 %v22, %v21
  %v28 = vpack.c.bf16 %v24, %v23
  %v29 = vpack.c.bf16 %v25, %v25
  %v30 = vld [vmem:[%s1] sm:$0xf]
  %v31 = vld [vmem:[%s1 + $0x4] sm:$0xf]
  %v32 = vld [vmem:[%s1 + $0x8] sm:$0xf]
  %v33 = vld [vmem:[%s1 + $0xc] sm:$0xf]
  %v34 = vlaneseq
  %v35 = vshrl.u32 %v34, 7
  %v36 = vsub.s32 0, %v35
  %v37 = vrot.slane %v18, %v36
  %v42 = vunpack.c.l.b16 %v30
  %v43 = vunpack.c.l.b16 %v31
  %v44 = vunpack.c.l.b16 %v32
  %v45 = vunpack.c.l.b16 %v33
  %v46 = vpack.c.b16 %v43, %v42
  %v47 = vpack.c.b16 %v45, %v44
  %vm50 = vcmask 261120
  %v52 = vsel %vm50, %v26, 0
  %v55 = vsel %vm50, %v27, 0
  %v58 = vsel %vm50, %v28, 0
  %v61 = vsel %vm50, %v29, 0
  %63 = vmatprep.subr.bf16.mxu0 0
  %64 = vmatpush1.bf16.msra.mxu0 0
  %65 = vmatprep.subr.bf16.mxu0 0
  %66 = vmatpush1.bf16.msra.mxu0 0
  %67 = vmatprep.subr.bf16.mxu0 0
  %68 = vmatpush1.bf16.msra.mxu0 0
  %69 = vmatprep.subr.bf16.mxu0 0
  %70 = vmatpush1.bf16.msra.mxu0 0
  %71 = vmatprep.subr.bf16.mxu0 0
  %72 = vmatpush1.bf16.msra.mxu0 0
  %73 = vmatprep.subr.bf16.mxu0 0
  %74 = vmatpush1.bf16.msra.mxu0 0
  %75 = vmatprep.subr.bf16.mxu0 0
  %76 = vmatpush1.bf16.msra.mxu0 %v47
  %77 = vmatprep.subr.bf16.mxu0 0
  %78 = vmatpush1.bf16.msra.mxu0 %v46
  %79 = vmatprep.subr.bf16.mxu0 0
  %80 = vmatpush2.bf16.msra.mxu0 0
  %81 = vmatprep.subr.bf16.mxu0 0
  %82 = vmatpush2.bf16.msra.mxu0 0
  %83 = vmatprep.subr.bf16.mxu0 0
  %84 = vmatpush2.bf16.msra.mxu0 0
  %85 = vmatprep.subr.bf16.mxu0 0
  %86 = vmatpush2.bf16.msra.mxu0 0
  %87 = vmatprep.subr.bf16.mxu0 0
  %88 = vmatpush2.bf16.msra.mxu0 0
  %89 = vmatprep.subr.bf16.mxu0 0
  %90 = vmatpush2.bf16.msra.mxu0 0
  %91 = vmatprep.subr.bf16.mxu0 0
  %92 = vmatpush2.bf16.msra.mxu0 0
  %93 = vmatprep.subr.bf16.mxu0 0
  %94 = vmatpush2.bf16.msra.mxu0 0
  %95 = vmatprep.mubr.bf16.mxu0 0
  %96 = vmatmul.mubr.bf16.gmra.mxu0 %v52
  %v97 = vpop.f32.mrf.mxu0
  %v98 = vadd.f32 %v37, %v97
  %v99 = vpop.f32.mrf.mxu0
  %v100 = vpop.f32.mrf.mxu0
  %v101 = vadd.f32 %v37, %v100
  %v102 = vpop.f32.mrf.mxu0
  %103 = vmatprep.mubr.bf16.mxu0 0
  %104 = vmatmul.mubr.bf16.gmra.mxu0 %v55
  %v105 = vpop.f32.mrf.mxu0
  %v106 = vadd.f32 %v37, %v105
  %v107 = vpop.f32.mrf.mxu0
  %v108 = vpop.f32.mrf.mxu0
  %v109 = vadd.f32 %v37, %v108
  %v110 = vpop.f32.mrf.mxu0
  %111 = vmatprep.mubr.bf16.mxu0 0
  %112 = vmatmul.mubr.bf16.gmra.mxu0 %v58
  %v113 = vpop.f32.mrf.mxu0
  %v114 = vadd.f32 %v37, %v113
  %v115 = vpop.f32.mrf.mxu0
  %v116 = vpop.f32.mrf.mxu0
  %v117 = vadd.f32 %v37, %v116
  %v118 = vpop.f32.mrf.mxu0
  %119 = vmatprep.mubr.bf16.mxu0 0
  %120 = vmatmul.mubr.bf16.gmra.mxu0 %v61
  %v121 = vpop.f32.mrf.mxu0
  %v122 = vadd.f32 %v37, %v121
  %v123 = vpop.f32.mrf.mxu0
  %v124 = vpop.f32.mrf.mxu0
  %v125 = vpop.f32.mrf.mxu0
  %126 = vdwg.mxu0
  %v127 = vtanh.pop %v98
  %v128 = vtanh.pop %v101
  %v129 = vtanh.pop %v106
  %v130 = vtanh.pop %v109
  %v131 = vtanh.pop %v114
  %v132 = vtanh.pop %v117
  %v133 = vtanh.pop %v122
  %v134 = vpack.c.bf16 %v128, %v127
  %v135 = vpack.c.bf16 %v130, %v129
  %v136 = vpack.c.bf16 %v132, %v131
  %v137 = vpack.c.bf16 %v133, %v133
  %v138 = vld [vmem:[%s2] sm:$0xf]
  %v139 = vld [vmem:[%s2 + $0x4] sm:$0xf]
  %v140 = vld [vmem:[%s2 + $0x8] sm:$0xf]
  %v141 = vld [vmem:[%s2 + $0xc] sm:$0xf]
  %v142 = vld [vmem:[%s2 + $0x10] sm:$0xf]
  %v143 = vld [vmem:[%s2 + $0x14] sm:$0xf]
  %v144 = vld [vmem:[%s2 + $0x18] sm:$0xf]
  %v145 = vld [vmem:[%s2 + $0x1c] sm:$0xf]
  %v146 = vld [vmem:[%s2 + $0x20] sm:$0xf]
  %v147 = vld [vmem:[%s2 + $0x24] sm:$0xf]
  %v148 = vld [vmem:[%s2 + $0x28] sm:$0xf]
  %v149 = vld [vmem:[%s2 + $0x2c] sm:$0xf]
  %v150 = vld [vmem:[%s2 + $0x30] sm:$0xf]
  %v151 = vld [vmem:[%s2 + $0x34] sm:$0xf]
  %v152 = vld [vmem:[%s2 + $0x38] sm:$0xf]
  %v153 = vld [vmem:[%s2 + $0x3c] sm:$0xf]
  %v154 = vlaneseq
  %v155 = vshrl.u32 %v154, 7
  %v156 = vsub.s32 1, %v155
  %v157 = vrot.slane %v18, %v156
  %v174 = vunpack.c.l.b16 %v138
  %v175 = vunpack.c.l.b16 %v139
  %v176 = vunpack.c.l.b16 %v140
  %v177 = vunpack.c.l.b16 %v141
  %v178 = vunpack.c.l.b16 %v142
  %v179 = vunpack.c.l.b16 %v143
  %v180 = vunpack.c.l.b16 %v144
  %v181 = vunpack.c.l.b16 %v145
  %v182 = vunpack.c.l.b16 %v146
  %v183 = vunpack.c.l.b16 %v147
  %v184 = vunpack.c.l.b16 %v148
  %v185 = vunpack.c.l.b16 %v149
  %v186 = vunpack.c.l.b16 %v150
  %v187 = vunpack.c.l.b16 %v151
  %v188 = vunpack.c.l.b16 %v152
  %v189 = vunpack.c.l.b16 %v153
  %v190 = vpack.c.b16 %v175, %v174
  %v191 = vpack.c.b16 %v177, %v176
  %v192 = vpack.c.b16 %v179, %v178
  %v193 = vpack.c.b16 %v181, %v180
  %v194 = vpack.c.b16 %v183, %v182
  %v195 = vpack.c.b16 %v185, %v184
  %v196 = vpack.c.b16 %v187, %v186
  %v197 = vpack.c.b16 %v189, %v188
  %206 = vmatprep.subr.bf16.mxu0 0
  %207 = vmatpush1.bf16.msra.mxu0 %v197
  %208 = vmatprep.subr.bf16.mxu0 0
  %209 = vmatpush1.bf16.msra.mxu0 %v196
  %210 = vmatprep.subr.bf16.mxu0 0
  %211 = vmatpush1.bf16.msra.mxu0 %v195
  %212 = vmatprep.subr.bf16.mxu0 0
  %213 = vmatpush1.bf16.msra.mxu0 %v194
  %214 = vmatprep.subr.bf16.mxu0 0
  %215 = vmatpush1.bf16.msra.mxu0 %v193
  %216 = vmatprep.subr.bf16.mxu0 0
  %217 = vmatpush1.bf16.msra.mxu0 %v192
  %218 = vmatprep.subr.bf16.mxu0 0
  %219 = vmatpush1.bf16.msra.mxu0 %v191
  %220 = vmatprep.subr.bf16.mxu0 0
  %221 = vmatpush1.bf16.msra.mxu0 %v190
  %222 = vmatprep.subr.bf16.mxu0 0
  %223 = vmatpush2.bf16.msra.mxu0 0
  %224 = vmatprep.subr.bf16.mxu0 0
  %225 = vmatpush2.bf16.msra.mxu0 0
  %226 = vmatprep.subr.bf16.mxu0 0
  %227 = vmatpush2.bf16.msra.mxu0 0
  %228 = vmatprep.subr.bf16.mxu0 0
  %229 = vmatpush2.bf16.msra.mxu0 0
  %230 = vmatprep.subr.bf16.mxu0 0
  %231 = vmatpush2.bf16.msra.mxu0 0
  %232 = vmatprep.subr.bf16.mxu0 0
  %233 = vmatpush2.bf16.msra.mxu0 0
  %234 = vmatprep.subr.bf16.mxu0 0
  %235 = vmatpush2.bf16.msra.mxu0 0
  %236 = vmatprep.subr.bf16.mxu0 0
  %237 = vmatpush2.bf16.msra.mxu0 0
  %238 = vmatprep.mubr.bf16.mxu0 0
  %239 = vmatmul.mubr.bf16.gmra.mxu0 %v134
  %v240 = vpop.f32.mrf.mxu0
  %v241 = vadd.f32 %v157, %v240
  %v242 = vpop.f32.mrf.mxu0
  %v243 = vpop.f32.mrf.mxu0
  %v244 = vadd.f32 %v157, %v243
  %v245 = vpop.f32.mrf.mxu0
  %246 = vmatprep.mubr.bf16.mxu0 0
  %247 = vmatmul.mubr.bf16.gmra.mxu0 %v135
  %v248 = vpop.f32.mrf.mxu0
  %v249 = vadd.f32 %v157, %v248
  %v250 = vpop.f32.mrf.mxu0
  %v251 = vpop.f32.mrf.mxu0
  %v252 = vadd.f32 %v157, %v251
  %v253 = vpop.f32.mrf.mxu0
  %254 = vmatprep.mubr.bf16.mxu0 0
  %255 = vmatmul.mubr.bf16.gmra.mxu0 %v136
  %v256 = vpop.f32.mrf.mxu0
  %v257 = vadd.f32 %v157, %v256
  %v258 = vpop.f32.mrf.mxu0
  %v259 = vpop.f32.mrf.mxu0
  %v260 = vadd.f32 %v157, %v259
  %v261 = vpop.f32.mrf.mxu0
  %262 = vmatprep.mubr.bf16.mxu0 0
  %263 = vmatmul.mubr.bf16.gmra.mxu0 %v137
  %v264 = vpop.f32.mrf.mxu0
  %v265 = vadd.f32 %v157, %v264
  %v266 = vpop.f32.mrf.mxu0
  %v267 = vpop.f32.mrf.mxu0
  %v268 = vpop.f32.mrf.mxu0
  %269 = vdwg.mxu0
  %v270 = vtanh.pop %v241
  %v271 = vtanh.pop %v244
  %v272 = vtanh.pop %v249
  %v273 = vtanh.pop %v252
  %v274 = vtanh.pop %v257
  %v275 = vtanh.pop %v260
  %v276 = vtanh.pop %v265
  %v277 = vlaneseq
  %v278 = vshrl.u32 %v277, 7
  %v279 = vsub.s32 2, %v278
  %v280 = vrot.slane %v18, %v279
  %v281 = vmul.f32 %v270, %v280
  %v282 = vmul.f32 %v271, %v280
  %v283 = vmul.f32 %v272, %v280
  %v284 = vmul.f32 %v273, %v280
  %v285 = vmul.f32 %v274, %v280
  %v286 = vmul.f32 %v275, %v280
  %v287 = vmul.f32 %v276, %v280
  %288 = vadd.xlane.f32.xlu0 %v281
  %v289 = vpop.xlane.xlu0 %288
  %290 = vadd.xlane.f32.xlu0 %v282
  %v291 = vpop.xlane.xlu0 %290
  %292 = vadd.xlane.f32.xlu0 %v283
  %v293 = vpop.xlane.xlu0 %292
  %294 = vadd.xlane.f32.xlu0 %v284
  %v295 = vpop.xlane.xlu0 %294
  %296 = vadd.xlane.f32.xlu0 %v285
  %v297 = vpop.xlane.xlu0 %296
  %298 = vadd.xlane.f32.xlu0 %v286
  %v299 = vpop.xlane.xlu0 %298
  %300 = vadd.xlane.f32.xlu0 %v287
  %v301 = vpop.xlane.xlu0 %300
  %v302 = vlaneseq
  %v303 = vshrl.u32 %v302, 7
  %v304 = vsub.s32 3, %v303
  %v305 = vrot.slane %v18, %v304
  %v306 = vadd.f32 %v289, %v305
  %v307 = vadd.f32 %v291, %v305
  %v308 = vadd.f32 %v293, %v305
  %v309 = vadd.f32 %v295, %v305
  %v310 = vadd.f32 %v297, %v305
  %v311 = vadd.f32 %v299, %v305
  %v312 = vadd.f32 %v301, %v305
  %v313 = vpack.c.bf16 %v307, %v306
  %v314 = vpack.c.bf16 %v309, %v308
  %v315 = vpack.c.bf16 %v311, %v310
  %v316 = vpack.c.bf16 %v312, %v312
  %v317 = vunpack.c.l.bf16 %v313
  %v318 = vunpack.c.h.bf16 %v313
  %v319 = vunpack.c.l.bf16 %v314
  %v320 = vunpack.c.h.bf16 %v314
  %v321 = vunpack.c.l.bf16 %v315
  %v322 = vunpack.c.h.bf16 %v315
  %v323 = vunpack.c.l.bf16 %v316
  %v324 = vsub.f32 %v306, %v317
  %v325 = vsub.f32 %v307, %v318
  %v326 = vsub.f32 %v308, %v319
  %v327 = vsub.f32 %v309, %v320
  %v328 = vsub.f32 %v310, %v321
  %v329 = vsub.f32 %v311, %v322
  %v330 = vsub.f32 %v312, %v323
  %v331 = vlaneseq
  %v332 = vshrl.u32 %v331, 7
  %v333 = vsub.s32 4, %v332
  %v334 = vrot.slane %v18, %v333
  %v335 = vmul.f32 %v270, %v334
  %v336 = vmul.f32 %v271, %v334
  %v337 = vmul.f32 %v272, %v334
  %v338 = vmul.f32 %v273, %v334
  %v339 = vmul.f32 %v274, %v334
  %v340 = vmul.f32 %v275, %v334
  %v341 = vmul.f32 %v276, %v334
  %343 = vset.pattern.permute.xlu0 0
  %344 = vperm.xlu0 %343, %v317
  %v345 = vpop.permute.xlu0 %344
  %348 = vset.pattern.permute.xlu0 0
  %349 = vperm.xlu0 %348, %v318
  %v350 = vpop.permute.xlu0 %349
  %353 = vset.pattern.permute.xlu0 0
  %354 = vperm.xlu0 %353, %v319
  %v355 = vpop.permute.xlu0 %354
  %358 = vset.pattern.permute.xlu0 0
  %359 = vperm.xlu0 %358, %v320
  %v360 = vpop.permute.xlu0 %359
  %363 = vset.pattern.permute.xlu0 0
  %364 = vperm.xlu0 %363, %v321
  %v365 = vpop.permute.xlu0 %364
  %368 = vset.pattern.permute.xlu0 0
  %369 = vperm.xlu0 %368, %v322
  %v370 = vpop.permute.xlu0 %369
  %373 = vset.pattern.permute.xlu0 0
  %374 = vperm.xlu0 %373, %v323
  %v375 = vpop.permute.xlu0 %374
  %v377 = vlaneseq
  %v378 = vshrl.u32 %v377, 7
  %v379 = vsub.s32 5, %v378
  %v380 = vrot.slane %v18, %v379
  %v381 = vmul.f32 %v345, %v380
  %v382 = vmul.f32 %v350, %v380
  %v383 = vmul.f32 %v355, %v380
  %v384 = vmul.f32 %v360, %v380
  %v385 = vmul.f32 %v365, %v380
  %v386 = vmul.f32 %v370, %v380
  %v387 = vmul.f32 %v375, %v380
  %v388 = vadd.f32 %v335, %v381
  %v389 = vadd.f32 %v336, %v382
  %v390 = vadd.f32 %v337, %v383
  %v391 = vadd.f32 %v338, %v384
  %v392 = vadd.f32 %v339, %v385
  %v393 = vadd.f32 %v340, %v386
  %v394 = vadd.f32 %v341, %v387
  %396 = vset.pattern.permute.xlu0 0
  %397 = vperm.xlu0 %396, %v324
  %v398 = vpop.permute.xlu0 %397
  %401 = vset.pattern.permute.xlu0 0
  %402 = vperm.xlu0 %401, %v325
  %v403 = vpop.permute.xlu0 %402
  %406 = vset.pattern.permute.xlu0 0
  %407 = vperm.xlu0 %406, %v326
  %v408 = vpop.permute.xlu0 %407
  %411 = vset.pattern.permute.xlu0 0
  %412 = vperm.xlu0 %411, %v327
  %v413 = vpop.permute.xlu0 %412
  %416 = vset.pattern.permute.xlu0 0
  %417 = vperm.xlu0 %416, %v328
  %v418 = vpop.permute.xlu0 %417
  %421 = vset.pattern.permute.xlu0 0
  %422 = vperm.xlu0 %421, %v329
  %v423 = vpop.permute.xlu0 %422
  %426 = vset.pattern.permute.xlu0 0
  %427 = vperm.xlu0 %426, %v330
  %v428 = vpop.permute.xlu0 %427
  %v430 = vlaneseq
  %v431 = vshrl.u32 %v430, 7
  %v432 = vsub.s32 6, %v431
  %v433 = vrot.slane %v18, %v432
  %v434 = vmul.f32 %v398, %v433
  %v435 = vmul.f32 %v403, %v433
  %v436 = vmul.f32 %v408, %v433
  %v437 = vmul.f32 %v413, %v433
  %v438 = vmul.f32 %v418, %v433
  %v439 = vmul.f32 %v423, %v433
  %v440 = vmul.f32 %v428, %v433
  %v441 = vadd.f32 %v388, %v434
  %v442 = vadd.f32 %v389, %v435
  %v443 = vadd.f32 %v390, %v436
  %v444 = vadd.f32 %v391, %v437
  %v445 = vadd.f32 %v392, %v438
  %v446 = vadd.f32 %v393, %v439
  %v447 = vadd.f32 %v394, %v440
  %v448 = vpack.c.bf16 %v442, %v441
  %v449 = vpack.c.bf16 %v444, %v443
  %v450 = vpack.c.bf16 %v446, %v445
  %v451 = vpack.c.bf16 %v447, %v447
  %v456 = vunpack.c.l.b16 %v448
  %v457 = vunpack.c.h.b16 %v448
  %v458 = vunpack.c.l.b16 %v449
  %v459 = vunpack.c.h.b16 %v449
  %v460 = vunpack.c.l.b16 %v450
  %v461 = vunpack.c.h.b16 %v450
  %v462 = vunpack.c.l.b16 %v451
  %v463 = vpack.c.b16 %v456, %v456
  %v464 = vpack.c.b16 %v457, %v457
  %v465 = vpack.c.b16 %v458, %v458
  %v466 = vpack.c.b16 %v459, %v459
  %v467 = vpack.c.b16 %v460, %v460
  %v468 = vpack.c.b16 %v461, %v461
  %v469 = vpack.c.b16 %v462, %v462
  %477 = vst [vmem:[%s4] sm:$0xf] %v463
  %478 = vst [vmem:[%s4 + $0x4] sm:$0xf] %v464
  %479 = vst [vmem:[%s4 + $0x8] sm:$0xf] %v465
  %480 = vst [vmem:[%s4 + $0xc] sm:$0xf] %v466
  %481 = vst [vmem:[%s4 + $0x10] sm:$0xf] %v467
  %482 = vst [vmem:[%s4 + $0x14] sm:$0xf] %v468
  %483 = vst [vmem:[%s4 + $0x18] sm:$0xf] %v469
  // Predicated region
  $region18: #{mlp_policy_forward.1} parent=0 // pred_check
    _
  $region19: #{mlp_policy_forward.1} parent=0 // pred_check_branch
    %485 = sbr.rel (0) target = $region21
  $region20: #{mlp_policy_forward.1} parent=0 // pred_region
    _
  $region21: #{mlp_policy_forward.1} parent=0 // pred_fallthru
    _
  // Predicated region
  $region22: #{mlp_policy_forward.1} parent=0 // pred_check
    _
  $region23: #{mlp_policy_forward.1} parent=0 // pred_check_branch
    %487 = sbr.rel (0) target = $region25
  $region24: #{mlp_policy_forward.1} parent=0 // pred_region
    _
  $region25: #{mlp_policy_forward.1} parent=0 // pred_fallthru
    _

</llo_original>
